<compile_context>
chip_gen: v7x
topology: tpu7x:2x2x1
jax: 0.10.0
libtpu: 0.0.40
codegen_flags: <defaults>
</compile_context>

<pallas_src>
import functools

import jax
import jax.numpy as jnp
from jax import lax
from jax.experimental import pallas as pl
from jax.experimental.pallas import tpu as pltpu


# ---------------------------------------------------------------------------
# Configuration (small synthetic sizes consistent with the module's forward).
# ---------------------------------------------------------------------------
FILTER_SIZES = (2, 3, 4)
KMAX = max(FILTER_SIZES)   # 4 -> merged im2col contraction dim = KMAX*H
HIDDEN = 32                # config.hidden_size (scaled down from 768)
NUM_FILTERS = 128          # config.num_filters (scaled from 256, lane-aligned)
NUM_CLASSES = 20           # config.num_classes
SEQ_LEN = 16               # config.pad_size (scaled down from 160)
BATCH = 2
C_PAD = 128                # lane-dense padded class dim for the FC output


# ---------------------------------------------------------------------------
# Fused kernel: im2col conv (all 3 filter sizes in one matmul) -> masked
# max-pool over time -> bias + ReLU -> FC.  Everything stays in VMEM.
# ---------------------------------------------------------------------------
def _fused_kernel(x_ref, w_ref, b_ref, fcw_ref, fcb_ref, o_ref, *,
                  seq_len, kmax, num_filters, filter_sizes):
    # x_ref  : (B, L_pad, H)   zero-padded encoder output
    # w_ref  : (kmax*H, 3F)    merged, zero-padded conv weights
    # b_ref  : (1, 3F)         merged conv biases
    # fcw_ref: (3F, C_PAD)     FC weight (lane-padded)
    # fcb_ref: (1, C_PAD)      FC bias   (lane-padded)
    # o_ref  : (B, C_PAD)
    B = x_ref.shape[0]
    H = x_ref.shape[2]
    L = seq_len
    F = num_filters
    nf3 = len(filter_sizes) * F

    # im2col LHS: concat kmax shifted windows along the lane axis -> K = kmax*H.
    windows = [x_ref[:, pl.ds(i, L), :] for i in range(kmax)]   # each (B, L, H)
    lhs = jnp.concatenate(windows, axis=-1)                     # (B, L, kmax*H)
    lhs = lhs.reshape(B * L, kmax * H)                          # (B*L, 128)

    # One MXU matmul covers all filter sizes: (B*L, 128) x (128, 3F).
    acc = jnp.dot(lhs, w_ref[...], preferred_element_type=jnp.float32)
    acc = acc.reshape(B, L, nf3)

    # Mask time positions past each filter's valid conv length (t >= L-k+1).
    t_idx = lax.broadcasted_iota(jnp.int32, (L, nf3), 0)
    c_idx = lax.broadcasted_iota(jnp.int32, (L, nf3), 1)
    limit = jnp.full((L, nf3), L - filter_sizes[0] + 1, jnp.int32)
    for gi, k in enumerate(filter_sizes):
        limit = jnp.where(c_idx >= gi * F, L - k + 1, limit)
    valid = (t_idx < limit)[None, :, :]                         # (1, L, 3F)
    acc = jnp.where(valid, acc, -jnp.inf)

    # max_pool1d over time, then bias + ReLU (hoisted past the max: exact).
    pooled = jnp.max(acc, axis=1)                               # (B, 3F)
    pooled = jnp.maximum(pooled + b_ref[...], 0.0)

    # Final fully-connected layer, lane-dense output.
    o_ref[...] = (
        jnp.dot(pooled, fcw_ref[...], preferred_element_type=jnp.float32)
        + fcb_ref[...]
    )


# ---------------------------------------------------------------------------
# Weight prep: merge the per-filter-size conv weights into one im2col RHS.
# ---------------------------------------------------------------------------
def _prep_merged_weights(params):
    w_parts, b_parts = [], []
    for k in FILTER_SIZES:
        w = params[f"conv{k}_w"]                                # (k, H, F)
        w = jnp.pad(w, ((0, KMAX - k), (0, 0), (0, 0)))         # (KMAX, H, F)
        w_parts.append(w.reshape(KMAX * HIDDEN, NUM_FILTERS))   # (KMAX*H, F)
        b_parts.append(params[f"conv{k}_b"])                    # (1, F)
    w_all = jnp.concatenate(w_parts, axis=1)                    # (KMAX*H, 3F)
    b_all = jnp.concatenate(b_parts, axis=1)                    # (1, 3F)
    fc_w = jnp.pad(params["fc_w"], ((0, 0), (0, C_PAD - NUM_CLASSES)))
    fc_b = jnp.pad(params["fc_b"], ((0, 0), (0, C_PAD - NUM_CLASSES)))
    return w_all, b_all, fc_w, fc_b


# ---------------------------------------------------------------------------
# Model wrapper: one fused pallas_call for the whole classifier head.
# ---------------------------------------------------------------------------
@jax.jit
def model_forward(enc, params):
    B, L, H = enc.shape
    nf3 = NUM_FILTERS * len(FILTER_SIZES)

    w_all, b_all, fc_w, fc_b = _prep_merged_weights(params)

    # Zero-pad the sequence so all KMAX shifted windows have L rows
    # (rounded to a sublane multiple for a clean layout).
    l_pad = ((L + KMAX - 1 + 7) // 8) * 8
    enc_pad = jnp.pad(enc, ((0, 0), (0, l_pad - L), (0, 0)))

    kernel = functools.partial(
        _fused_kernel,
        seq_len=L, kmax=KMAX,
        num_filters=NUM_FILTERS, filter_sizes=FILTER_SIZES,
    )

    out = pl.pallas_call(
        kernel,
        out_shape=jax.ShapeDtypeStruct((B, C_PAD), jnp.float32),
        grid_spec=pltpu.PrefetchScalarGridSpec(
            num_scalar_prefetch=0,
            grid=(1,),
            in_specs=[
                pl.BlockSpec((B, l_pad, H), lambda i: (0, 0, 0)),
                pl.BlockSpec((KMAX * H, nf3), lambda i: (0, 0)),
                pl.BlockSpec((1, nf3), lambda i: (0, 0)),
                pl.BlockSpec((nf3, C_PAD), lambda i: (0, 0)),
                pl.BlockSpec((1, C_PAD), lambda i: (0, 0)),
            ],
            out_specs=pl.BlockSpec((B, C_PAD), lambda i: (0, 0)),
        ),
        compiler_params=pltpu.CompilerParams(
            dimension_semantics=("arbitrary",)
        ),
    )(enc_pad, w_all, b_all, fc_w, fc_b)

    return out[:, :NUM_CLASSES]                                  # (B, num_classes)


# ---------------------------------------------------------------------------
# Parameter init + pure-JAX reference (sanity check).
# ---------------------------------------------------------------------------
def init_params(key):
    params = {}
    for k in FILTER_SIZES:
        key, kw, kb = jax.random.split(key, 3)
        # PyTorch Conv2d weight is (F, 1, k, H); stored here as (k, H, F).
        params[f"conv{k}_w"] = (
            jax.random.normal(kw, (k, HIDDEN, NUM_FILTERS), jnp.float32) * 0.05
        )
        params[f"conv{k}_b"] = (
            jax.random.normal(kb, (1, NUM_FILTERS), jnp.float32) * 0.05
        )
    key, kw, kb = jax.random.split(key, 3)
    params["fc_w"] = (
        jax.random.normal(
            kw, (NUM_FILTERS * len(FILTER_SIZES), NUM_CLASSES), jnp.float32
        )
        * 0.05
    )
    params["fc_b"] = jax.random.normal(kb, (1, NUM_CLASSES), jnp.float32) * 0.05
    return params


def reference_forward(enc, params):
    """Pure-JAX reference of the TextCNN head (conv+ReLU+maxpool, concat, fc)."""
    pooled = []
    for k in FILTER_SIZES:
        w = params[f"conv{k}_w"]  # (k, H, F)
        b = params[f"conv{k}_b"]  # (1, F)
        l_out = SEQ_LEN - k + 1
        s = sum(
            jnp.einsum("blh,hf->blf", enc[:, i : i + l_out, :], w[i])
            for i in range(k)
        )
        s = jax.nn.relu(s + b[None, :, :])
        pooled.append(jnp.max(s, axis=1))
    out = jnp.concatenate(pooled, axis=1)
    return out @ params["fc_w"] + params["fc_b"]


if __name__ == "__main__":
    key = jax.random.PRNGKey(0)
    key, ke = jax.random.split(key)
    # Synthetic stand-in for the BERT encoder output (B, L, H).
    enc = jax.random.normal(ke, (BATCH, SEQ_LEN, HIDDEN), jnp.float32)
    params = init_params(key)

    out = model_forward(enc, params)
    out = jax.block_until_ready(out)

    ref = reference_forward(enc, params)
    assert out.shape == (BATCH, NUM_CLASSES)
    assert jnp.allclose(out, ref, atol=1e-4, rtol=1e-4)

    print("KERNEL_OK")
</pallas_src>

<mosaic_0001>
module attributes {stable_mosaic.version = 11 : i64} {
  func.func @_fused_kernel(%arg0: i32, %arg1: memref<2x24x32xf32, #tpu.memory_space<vmem>>, %arg2: memref<128x384xf32, #tpu.memory_space<vmem>>, %arg3: memref<1x384xf32, #tpu.memory_space<vmem>>, %arg4: memref<384x128xf32, #tpu.memory_space<vmem>>, %arg5: memref<1x128xf32, #tpu.memory_space<vmem>>, %arg6: memref<2x128xf32, #tpu.memory_space<vmem>>) attributes {dimension_semantics = [#tpu.dimension_semantics<arbitrary>], iteration_bounds = array<i64: 1>, scalar_prefetch = 0 : i64, scratch_operands = 0 : i64, tpu.core_type = #tpu.core_type<tc>, window_params = [{pipeline_mode = #tpu.pipeline_mode<synchronous>, transform_indices = @transform_0, window_bounds = array<i64: 2, 24, 32>}, {pipeline_mode = #tpu.pipeline_mode<synchronous>, transform_indices = @transform_1, window_bounds = array<i64: 128, 384>}, {pipeline_mode = #tpu.pipeline_mode<synchronous>, transform_indices = @transform_2, window_bounds = array<i64: 1, 384>}, {pipeline_mode = #tpu.pipeline_mode<synchronous>, transform_indices = @transform_3, window_bounds = array<i64: 384, 128>}, {pipeline_mode = #tpu.pipeline_mode<synchronous>, transform_indices = @transform_4, window_bounds = array<i64: 1, 128>}, {pipeline_mode = #tpu.pipeline_mode<synchronous>, transform_indices = @transform_5, window_bounds = array<i64: 2, 128>}]} {
    %c0 = arith.constant 0 : index
    %c0_0 = arith.constant 0 : index
    %c0_1 = arith.constant 0 : index
    %0 = vector.load %arg1[%c0, %c0_0, %c0_1] : memref<2x24x32xf32, #tpu.memory_space<vmem>>, vector<2x16x32xf32>
    %c0_2 = arith.constant 0 : index
    %c1 = arith.constant 1 : index
    %c0_3 = arith.constant 0 : index
    %1 = vector.load %arg1[%c0_2, %c1, %c0_3] : memref<2x24x32xf32, #tpu.memory_space<vmem>>, vector<2x16x32xf32>
    %c0_4 = arith.constant 0 : index
    %c2 = arith.constant 2 : index
    %c0_5 = arith.constant 0 : index
    %2 = vector.load %arg1[%c0_4, %c2, %c0_5] : memref<2x24x32xf32, #tpu.memory_space<vmem>>, vector<2x16x32xf32>
    %c0_6 = arith.constant 0 : index
    %c3 = arith.constant 3 : index
    %c0_7 = arith.constant 0 : index
    %3 = vector.load %arg1[%c0_6, %c3, %c0_7] : memref<2x24x32xf32, #tpu.memory_space<vmem>>, vector<2x16x32xf32>
    %4 = tpu.concatenate %0, %1, %2, %3 in 2 : vector<2x16x32xf32>, vector<2x16x32xf32>, vector<2x16x32xf32>, vector<2x16x32xf32> -> vector<2x16x128xf32>
    %5 = vector.shape_cast %4 : vector<2x16x128xf32> to vector<32x128xf32>
    %c0_8 = arith.constant 0 : index
    %c0_9 = arith.constant 0 : index
    %6 = vector.load %arg2[%c0_8, %c0_9] : memref<128x384xf32, #tpu.memory_space<vmem>>, vector<128x384xf32>
    %cst = arith.constant dense<0.000000e+00> : vector<32x384xf32>
    %7 = tpu.matmul %5, %6, %cst {dimension_numbers = #tpu.dot_dimension_numbers<[1], [0], [0], [1], [0, 0, 1, 1], [], []>} : vector<32x128xf32>, vector<128x384xf32>, vector<32x384xf32> -> vector<32x384xf32>
    %8 = vector.shape_cast %7 : vector<32x384xf32> to vector<2x16x384xf32>
    %9 = tpu.iota {dimensions = array<i32: 0>} : vector<16x384xi32>
    %10 = tpu.iota {dimensions = array<i32: 1>} : vector<16x384xi32>
    %c15_i32 = arith.constant 15 : i32
    %11 = vector.broadcast %c15_i32 : i32 to vector<16x384xi32>
    %c0_i32 = arith.constant 0 : i32
    %12 = vector.broadcast %c0_i32 : i32 to vector<16x384xi32>
    %13 = arith.cmpi sge, %10, %12 : vector<16x384xi32>
    %c15_i32_10 = arith.constant 15 : i32
    %14 = vector.broadcast %c15_i32_10 : i32 to vector<16x384xi32>
    %15 = arith.select %13, %14, %11 : vector<16x384xi1>, vector<16x384xi32>
    %c128_i32 = arith.constant 128 : i32
    %16 = vector.broadcast %c128_i32 : i32 to vector<16x384xi32>
    %17 = arith.cmpi sge, %10, %16 : vector<16x384xi32>
    %c14_i32 = arith.constant 14 : i32
    %18 = vector.broadcast %c14_i32 : i32 to vector<16x384xi32>
    %19 = arith.select %17, %18, %15 : vector<16x384xi1>, vector<16x384xi32>
    %c256_i32 = arith.constant 256 : i32
    %20 = vector.broadcast %c256_i32 : i32 to vector<16x384xi32>
    %21 = arith.cmpi sge, %10, %20 : vector<16x384xi32>
    %c13_i32 = arith.constant 13 : i32
    %22 = vector.broadcast %c13_i32 : i32 to vector<16x384xi32>
    %23 = arith.select %21, %22, %19 : vector<16x384xi1>, vector<16x384xi32>
    %24 = arith.cmpi slt, %9, %23 : vector<16x384xi32>
    %25 = vector.shape_cast %24 : vector<16x384xi1> to vector<1x16x384xi1>
    %cst_11 = arith.constant 0xFF800000 : f32
    %26 = vector.shape_cast %25 : vector<1x16x384xi1> to vector<1x16x384xi1>
    %27 = vector.broadcast %26 : vector<1x16x384xi1> to vector<2x16x384xi1>
    %28 = vector.broadcast %cst_11 : f32 to vector<2x16x384xf32>
    %29 = arith.select %27, %8, %28 : vector<2x16x384xi1>, vector<2x16x384xf32>
    %cst_12 = arith.constant dense<0xFF800000> : vector<2x384xf32>
    %30 = vector.multi_reduction <maximumf>, %29, %cst_12 [1] : vector<2x16x384xf32> to vector<2x384xf32>
    %c0_13 = arith.constant 0 : index
    %c0_14 = arith.constant 0 : index
    %31 = vector.load %arg3[%c0_13, %c0_14] : memref<1x384xf32, #tpu.memory_space<vmem>>, vector<1x384xf32>
    %32 = vector.broadcast %31 : vector<1x384xf32> to vector<2x384xf32>
    %33 = arith.addf %30, %32 : vector<2x384xf32>
    %cst_15 = arith.constant 0.000000e+00 : f32
    %34 = vector.broadcast %cst_15 : f32 to vector<2x384xf32>
    %35 = arith.maximumf %33, %34 : vector<2x384xf32>
    %c0_16 = arith.constant 0 : index
    %c0_17 = arith.constant 0 : index
    %36 = vector.load %arg4[%c0_16, %c0_17] : memref<384x128xf32, #tpu.memory_space<vmem>>, vector<384x128xf32>
    %cst_18 = arith.constant dense<0.000000e+00> : vector<2x128xf32>
    %37 = tpu.matmul %35, %36, %cst_18 {dimension_numbers = #tpu.dot_dimension_numbers<[1], [0], [0], [1], [0, 0, 1, 1], [], []>} : vector<2x384xf32>, vector<384x128xf32>, vector<2x128xf32> -> vector<2x128xf32>
    %c0_19 = arith.constant 0 : index
    %c0_20 = arith.constant 0 : index
    %38 = vector.load %arg5[%c0_19, %c0_20] : memref<1x128xf32, #tpu.memory_space<vmem>>, vector<1x128xf32>
    %39 = vector.broadcast %38 : vector<1x128xf32> to vector<2x128xf32>
    %40 = arith.addf %37, %39 : vector<2x128xf32>
    %c0_21 = arith.constant 0 : index
    %c0_22 = arith.constant 0 : index
    %41 = vector.load %arg6[%c0_21, %c0_22] : memref<2x128xf32, #tpu.memory_space<vmem>>, vector<2x128xf32>
    tpu.vector_store %arg6[%c0_21, %c0_22], %40 {strides = array<i32>} : memref<2x128xf32, #tpu.memory_space<vmem>>, vector<2x128xf32>,
    return
  }
  func.func @transform_0(%arg0: i32) -> (i32, i32, i32) {
    %c0_i32 = arith.constant 0 : i32
    %c0_i32_0 = arith.constant 0 : i32
    %c0_i32_1 = arith.constant 0 : i32
    %c0_i32_2 = arith.constant 0 : i32
    return %c0_i32, %c0_i32_0, %c0_i32_1 : i32, i32, i32
  }
  func.func @transform_1(%arg0: i32) -> (i32, i32) {
    %c0_i32 = arith.constant 0 : i32
    %c0_i32_0 = arith.constant 0 : i32
    %c0_i32_1 = arith.constant 0 : i32
    return %c0_i32, %c0_i32_0 : i32, i32
  }
  func.func @transform_2(%arg0: i32) -> (i32, i32) {
    %c0_i32 = arith.constant 0 : i32
    %c0_i32_0 = arith.constant 0 : i32
    %c0_i32_1 = arith.constant 0 : i32
    return %c0_i32, %c0_i32_0 : i32, i32
  }
  func.func @transform_3(%arg0: i32) -> (i32, i32) {
    %c0_i32 = arith.constant 0 : i32
    %c0_i32_0 = arith.constant 0 : i32
    %c0_i32_1 = arith.constant 0 : i32
    return %c0_i32, %c0_i32_0 : i32, i32
  }
  func.func @transform_4(%arg0: i32) -> (i32, i32) {
    %c0_i32 = arith.constant 0 : i32
    %c0_i32_0 = arith.constant 0 : i32
    %c0_i32_1 = arith.constant 0 : i32
    return %c0_i32, %c0_i32_0 : i32, i32
  }
  func.func @transform_5(%arg0: i32) -> (i32, i32) {
    %c0_i32 = arith.constant 0 : i32
    %c0_i32_0 = arith.constant 0 : i32
    %c0_i32_1 = arith.constant 0 : i32
    return %c0_i32, %c0_i32_0 : i32, i32
  }
}

</mosaic_0001>

<llo_original>
// kernel: model_forward.1
$region0: #{model_forward.1}
  #allocation0 [shape = 'u32[]', space=smem, size = 0x4, offset = 0x4, fixed_abs, tag = 'smem constant byte address 0x4 - core index']
  #allocation1 [shape = 'u32[144,128]{1,0:T(1,128)}', space=vmem, size = 0x12000, scoped, tag = 'internal scratch']
  %s0 = inlined_call_operand.vmem [shape: f32[2,24,32], index: 0, kind: input, shape index: {}]
  %s1 = inlined_call_operand.vmem [shape: f32[128,384], index: 1, kind: input, shape index: {}]
  %s2 = inlined_call_operand.vmem [shape: f32[1,384], index: 2, kind: input, shape index: {}]
  %s3 = inlined_call_operand.vmem [shape: f32[384,128], index: 3, kind: input, shape index: {}]
  %s4 = inlined_call_operand.vmem [shape: f32[1,128], index: 4, kind: input, shape index: {}]
  %s5 = inlined_call_operand.hbm [shape: f32[2,128], index: 5, kind: output, shape index: {}]
  %s6 = sld [smem:[#allocation0]]
  $region30: #{model_forward.1} parent=0
    _
  %s8 = ssub.s32 1, %s6
  %s9 = scalar_select 0, %s8, %s6
  $region1: #{model_forward.1} parent=0
    #allocation2 [shape = 'u8[1024]{0}', space=vmem, size = 0x400, scoped, tag = 'output window, operand 0, single buffered']
    #allocation3 [shape = 's32[1]{0}', space=sflag, size = 0x4, scoped, tag = 'scoped memory for model_forward.1']
    %10 = vsyncpa [#allocation3], 0
    // Predicated region
    $region2: #{model_forward.1} parent=1 // pred_check
      _
    $region3: #{model_forward.1} parent=1 // pred_check_branch
      %12 = sbr.rel (0) target = $region5
    $region4: #{model_forward.1} parent=1 // pred_region
      _
    $region5: #{model_forward.1} parent=1 // pred_fallthru
      _
    // Predicated region
    $region6: #{model_forward.1} parent=1 // pred_check
      _
    $region7: #{model_forward.1} parent=1 // pred_check_branch
      %14 = sbr.rel (0) target = $region9
    $region8: #{model_forward.1} parent=1 // pred_region
      _
    $region9: #{model_forward.1} parent=1 // pred_fallthru
      _
    // Predicated region
    $region10: #{model_forward.1} parent=1 // pred_check
      _
    $region11: #{model_forward.1} parent=1 // pred_check_branch
      %16 = sbr.rel (0) target = $region13
    $region12: #{model_forward.1} parent=1 // pred_region
      _
    $region13: #{model_forward.1} parent=1 // pred_fallthru
      _
    // Predicated region
    $region14: #{model_forward.1} parent=1 // pred_check
      _
    $region15: #{model_forward.1} parent=1 // pred_check_branch
      %18 = sbr.rel (0) target = $region17
    $region16: #{model_forward.1} parent=1 // pred_region
      _
    $region17: #{model_forward.1} parent=1 // pred_fallthru
      _
    // Predicated region
    $region18: #{model_forward.1} parent=1 // pred_check
      _
    $region19: #{model_forward.1} parent=1 // pred_check_branch
      %20 = sbr.rel (0) target = $region21
    $region20: #{model_forward.1} parent=1 // pred_region
      _
    $region21: #{model_forward.1} parent=1 // pred_fallthru
      _
    %v21 = vld [vmem:[%s0] sm:$0xff]
    %v22 = vld [vmem:[%s0 + $0x8] sm:$0xff]
    %v23 = vld [vmem:[%s0 + $0x18] sm:$0xff]
    %v24 = vld [vmem:[%s0 + $0x20] sm:$0xff]
    %v25 = vld [vmem:[%s0 + $0x1] sm:$0xff]
    %v26 = vld [vmem:[%s0 + $0x9] sm:$0xff]
    %v27 = vld [vmem:[%s0 + $0x19] sm:$0xff]
    %v28 = vld [vmem:[%s0 + $0x21] sm:$0xff]
    %v29 = vld [vmem:[%s0 + $0x2] sm:$0xff]
    %v30 = vld [vmem:[%s0 + $0xa] sm:$0xff]
    %v31 = vld [vmem:[%s0 + $0x1a] sm:$0xff]
    %v32 = vld [vmem:[%s0 + $0x22] sm:$0xff]
    %v33 = vld [vmem:[%s0 + $0x3] sm:$0xff]
    %v34 = vld [vmem:[%s0 + $0xb] sm:$0xff]
    %v35 = vld [vmem:[%s0 + $0x1b] sm:$0xff]
    %v36 = vld [vmem:[%s0 + $0x23] sm:$0xff]
    %41 = vrot.lane.b32.xlu0 %v25, 32
    %v42 = vpop.permute.xlu0 %41
    %43 = vrot.lane.b32.xlu0 %v26, 32
    %v44 = vpop.permute.xlu0 %43
    %45 = vrot.lane.b32.xlu0 %v27, 32
    %v46 = vpop.permute.xlu0 %45
    %47 = vrot.lane.b32.xlu0 %v28, 32
    %v48 = vpop.permute.xlu0 %47
    %57 = vrot.lane.b32.xlu0 %v29, 64
    %v58 = vpop.permute.xlu0 %57
    %59 = vrot.lane.b32.xlu0 %v30, 64
    %v60 = vpop.permute.xlu0 %59
    %61 = vrot.lane.b32.xlu0 %v31, 64
    %v62 = vpop.permute.xlu0 %61
    %63 = vrot.lane.b32.xlu0 %v32, 64
    %v64 = vpop.permute.xlu0 %63
    %73 = vrot.lane.b32.xlu0 %v33, 96
    %v74 = vpop.permute.xlu0 %73
    %75 = vrot.lane.b32.xlu0 %v34, 96
    %v76 = vpop.permute.xlu0 %75
    %77 = vrot.lane.b32.xlu0 %v35, 96
    %v78 = vpop.permute.xlu0 %77
    %79 = vrot.lane.b32.xlu0 %v36, 96
    %v80 = vpop.permute.xlu0 %79
    %vm85 = vcmask 261120
    %v86 = vsel %vm85, %v21, %v42
    %v87 = vsel %vm85, %v22, %v44
    %v88 = vsel %vm85, %v23, %v46
    %v89 = vsel %vm85, %v24, %v48
    %vm90 = vcmask 523264
    %v91 = vsel %vm90, %v86, %v58
    %v92 = vsel %vm90, %v87, %v60
    %v93 = vsel %vm90, %v88, %v62
    %v94 = vsel %vm90, %v89, %v64
    %vm95 = vcmask 785408
    %v96 = vsel %vm95, %v91, %v74
    %v97 = vsel %vm95, %v92, %v76
    %v98 = vsel %vm95, %v93, %v78
    %v99 = vsel %vm95, %v94, %v80
    %v100 = vld [vmem:[%s1] sm:$0xff]
    %v101 = vld [vmem:[%s1 + $0x8] sm:$0xff]
    %v102 = vld [vmem:[%s1 + $0x10] sm:$0xff]
    %v103 = vld [vmem:[%s1 + $0x18] sm:$0xff]
    %v104 = vld [vmem:[%s1 + $0x20] sm:$0xff]
    %v105 = vld [vmem:[%s1 + $0x28] sm:$0xff]
    %v106 = vld [vmem:[%s1 + $0x30] sm:$0xff]
    %v107 = vld [vmem:[%s1 + $0x38] sm:$0xff]
    %v108 = vld [vmem:[%s1 + $0x40] sm:$0xff]
    %v109 = vld [vmem:[%s1 + $0x48] sm:$0xff]
    %v110 = vld [vmem:[%s1 + $0x50] sm:$0xff]
    %v111 = vld [vmem:[%s1 + $0x58] sm:$0xff]
    %v112 = vld [vmem:[%s1 + $0x60] sm:$0xff]
    %v113 = vld [vmem:[%s1 + $0x68] sm:$0xff]
    %v114 = vld [vmem:[%s1 + $0x70] sm:$0xff]
    %v115 = vld [vmem:[%s1 + $0x78] sm:$0xff]
    %v116 = vld [vmem:[%s1 + $0x80] sm:$0xff]
    %v117 = vld [vmem:[%s1 + $0x88] sm:$0xff]
    %v118 = vld [vmem:[%s1 + $0x90] sm:$0xff]
    %v119 = vld [vmem:[%s1 + $0x98] sm:$0xff]
    %v120 = vld [vmem:[%s1 + $0xa0] sm:$0xff]
    %v121 = vld [vmem:[%s1 + $0xa8] sm:$0xff]
    %v122 = vld [vmem:[%s1 + $0xb0] sm:$0xff]
    %v123 = vld [vmem:[%s1 + $0xb8] sm:$0xff]
    %v124 = vld [vmem:[%s1 + $0xc0] sm:$0xff]
    %v125 = vld [vmem:[%s1 + $0xc8] sm:$0xff]
    %v126 = vld [vmem:[%s1 + $0xd0] sm:$0xff]
    %v127 = vld [vmem:[%s1 + $0xd8] sm:$0xff]
    %v128 = vld [vmem:[%s1 + $0xe0] sm:$0xff]
    %v129 = vld [vmem:[%s1 + $0xe8] sm:$0xff]
    %v130 = vld [vmem:[%s1 + $0xf0] sm:$0xff]
    %v131 = vld [vmem:[%s1 + $0xf8] sm:$0xff]
    %v132 = vld [vmem:[%s1 + $0x100] sm:$0xff]
    %v133 = vld [vmem:[%s1 + $0x108] sm:$0xff]
    %v134 = vld [vmem:[%s1 + $0x110] sm:$0xff]
    %v135 = vld [vmem:[%s1 + $0x118] sm:$0xff]
    %v136 = vld [vmem:[%s1 + $0x120] sm:$0xff]
    %v137 = vld [vmem:[%s1 + $0x128] sm:$0xff]
    %v138 = vld [vmem:[%s1 + $0x130] sm:$0xff]
    %v139 = vld [vmem:[%s1 + $0x138] sm:$0xff]
    %v140 = vld [vmem:[%s1 + $0x140] sm:$0xff]
    %v141 = vld [vmem:[%s1 + $0x148] sm:$0xff]
    %v142 = vld [vmem:[%s1 + $0x150] sm:$0xff]
    %v143 = vld [vmem:[%s1 + $0x158] sm:$0xff]
    %v144 = vld [vmem:[%s1 + $0x160] sm:$0xff]
    %v145 = vld [vmem:[%s1 + $0x168] sm:$0xff]
    %v146 = vld [vmem:[%s1 + $0x170] sm:$0xff]
    %v147 = vld [vmem:[%s1 + $0x178] sm:$0xff]
    %148 = vmatprep.subr.mxu0 %v101
    %149 = vmatpush1.msra.mxu0 %v100
    %150 = vmatprep.subr.mxu0 %v104
    %151 = vmatpush1.msra.mxu0 %v103
    %152 = vmatprep.subr.mxu0 %v107
    %153 = vmatpush1.msra.mxu0 %v106
    %154 = vmatprep.subr.mxu0 %v110
    %155 = vmatpush1.msra.mxu0 %v109
    %156 = vmatprep.subr.mxu0 %v113
    %157 = vmatpush1.msra.mxu0 %v112
    %158 = vmatprep.subr.mxu0 %v116
    %159 = vmatpush1.msra.mxu0 %v115
    %160 = vmatprep.subr.mxu0 %v119
    %161 = vmatpush1.msra.mxu0 %v118
    %162 = vmatprep.subr.mxu0 %v122
    %163 = vmatpush1.msra.mxu0 %v121
    %164 = vmatprep.subr.mxu0 %v125
    %165 = vmatpush1.msra.mxu0 %v124
    %166 = vmatprep.subr.mxu0 %v128
    %167 = vmatpush1.msra.mxu0 %v127
    %168 = vmatprep.subr.mxu0 %v131
    %169 = vmatpush1.msra.mxu0 %v130
    %170 = vmatprep.subr.mxu0 %v134
    %171 = vmatpush1.msra.mxu0 %v133
    %172 = vmatprep.subr.mxu0 %v137
    %173 = vmatpush1.msra.mxu0 %v136
    %174 = vmatprep.subr.mxu0 %v140
    %175 = vmatpush1.msra.mxu0 %v139
    %176 = vmatprep.subr.mxu0 %v143
    %177 = vmatpush1.msra.mxu0 %v142
    %178 = vmatprep.subr.mxu0 %v146
    %179 = vmatpush1.msra.mxu0 %v145
    %180 = vmatprep.subr.mxu0 0.0
    %181 = vmatpush1.msra.mxu0 0.0
    %182 = vmatprep.subr.mxu0 0.0
    %183 = vmatpush1.msra.mxu0 0.0
    %184 = vmatprep.subr.mxu0 0.0
    %185 = vmatpush1.msra.mxu0 0.0
    %186 = vmatprep.subr.mxu0 0.0
    %187 = vmatpush1.msra.mxu0 0.0
    %188 = vmatprep.subr.mxu0 0.0
    %189 = vmatpush1.msra.mxu0 0.0
    %190 = vmatprep.subr.mxu0 0.0
    %191 = vmatpush1.msra.mxu0 0.0
    %192 = vmatprep.subr.mxu0 0.0
    %193 = vmatpush1.msra.mxu0 0.0
    %194 = vmatprep.subr.mxu0 0.0
    %195 = vmatpush1.msra.mxu0 0.0
    %196 = vmatprep.subr.mxu0 0.0
    %197 = vmatpush1.msra.mxu0 0.0
    %198 = vmatprep.subr.mxu0 0.0
    %199 = vmatpush1.msra.mxu0 0.0
    %200 = vmatprep.subr.mxu0 0.0
    %201 = vmatpush1.msra.mxu0 0.0
    %202 = vmatprep.subr.mxu0 0.0
    %203 = vmatpush1.msra.mxu0 0.0
    %204 = vmatprep.subr.mxu0 0.0
    %205 = vmatpush1.msra.mxu0 0.0
    %206 = vmatprep.subr.mxu0 0.0
    %207 = vmatpush1.msra.mxu0 0.0
    %208 = vmatprep.subr.mxu0 0.0
    %209 = vmatpush1.msra.mxu0 0.0
    %210 = vmatprep.subr.mxu0 0.0
    %211 = vmatpush1.msra.mxu0 0.0
    %212 = vmatprep.mubr.f32.mxu0 0.0
    %213 = vmatmul.mubr.f32.gmra.mrb[0].mxu0 %v96
    %v214 = vpop.f32.mrb[0].mxu0
    %v215 = vadd.f32 0.0, %v214
    %v216 = vpop.f32.mrb[0].mxu0
    %v217 = vadd.f32 0.0, %v216
    %218 = vmatprep.mubr.f32.mxu0 0.0
    %219 = vmatmul.mubr.f32.gmra.mrb[0].mxu0 %v97
    %v220 = vpop.f32.mrb[0].mxu0
    %v221 = vadd.f32 0.0, %v220
    %v222 = vpop.f32.mrb[0].mxu0
    %v223 = vadd.f32 0.0, %v222
    %224 = vmatprep.mubr.f32.mxu0 0.0
    %225 = vmatmul.mubr.f32.gmra.mrb[0].mxu0 %v98
    %v226 = vpop.f32.mrb[0].mxu0
    %v227 = vadd.f32 0.0, %v226
    %v228 = vpop.f32.mrb[0].mxu0
    %v229 = vadd.f32 0.0, %v228
    %230 = vmatprep.mubr.f32.mxu0 0.0
    %231 = vmatmul.mubr.f32.gmra.mrb[0].mxu0 %v99
    %v232 = vpop.f32.mrb[0].mxu0
    %v233 = vadd.f32 0.0, %v232
    %v234 = vpop.f32.mrb[0].mxu0
    %v235 = vadd.f32 0.0, %v234
    %236 = vdwg.mxu0
    %237 = vmatprep.subr.mxu0 0.0
    %238 = vmatpush1.msra.mxu0 %v102
    %239 = vmatprep.subr.mxu0 0.0
    %240 = vmatpush1.msra.mxu0 %v105
    %241 = vmatprep.subr.mxu0 0.0
    %242 = vmatpush1.msra.mxu0 %v108
    %243 = vmatprep.subr.mxu0 0.0
    %244 = vmatpush1.msra.mxu0 %v111
    %245 = vmatprep.subr.mxu0 0.0
    %246 = vmatpush1.msra.mxu0 %v114
    %247 = vmatprep.subr.mxu0 0.0
    %248 = vmatpush1.msra.mxu0 %v117
    %249 = vmatprep.subr.mxu0 0.0
    %250 = vmatpush1.msra.mxu0 %v120
    %251 = vmatprep.subr.mxu0 0.0
    %252 = vmatpush1.msra.mxu0 %v123
    %253 = vmatprep.subr.mxu0 0.0
    %254 = vmatpush1.msra.mxu0 %v126
    %255 = vmatprep.subr.mxu0 0.0
    %256 = vmatpush1.msra.mxu0 %v129
    %257 = vmatprep.subr.mxu0 0.0
    %258 = vmatpush1.msra.mxu0 %v132
    %259 = vmatprep.subr.mxu0 0.0
    %260 = vmatpush1.msra.mxu0 %v135
    %261 = vmatprep.subr.mxu0 0.0
    %262 = vmatpush1.msra.mxu0 %v138
    %263 = vmatprep.subr.mxu0 0.0
    %264 = vmatpush1.msra.mxu0 %v141
    %265 = vmatprep.subr.mxu0 0.0
    %266 = vmatpush1.msra.mxu0 %v144
    %267 = vmatprep.subr.mxu0 0.0
    %268 = vmatpush1.msra.mxu0 %v147
    %269 = vmatprep.subr.mxu0 0.0
    %270 = vmatpush1.msra.mxu0 0.0
    %271 = vmatprep.subr.mxu0 0.0
    %272 = vmatpush1.msra.mxu0 0.0
    %273 = vmatprep.subr.mxu0 0.0
    %274 = vmatpush1.msra.mxu0 0.0
    %275 = vmatprep.subr.mxu0 0.0
    %276 = vmatpush1.msra.mxu0 0.0
    %277 = vmatprep.subr.mxu0 0.0
    %278 = vmatpush1.msra.mxu0 0.0
    %279 = vmatprep.subr.mxu0 0.0
    %280 = vmatpush1.msra.mxu0 0.0
    %281 = vmatprep.subr.mxu0 0.0
    %282 = vmatpush1.msra.mxu0 0.0
    %283 = vmatprep.subr.mxu0 0.0
    %284 = vmatpush1.msra.mxu0 0.0
    %285 = vmatprep.subr.mxu0 0.0
    %286 = vmatpush1.msra.mxu0 0.0
    %287 = vmatprep.subr.mxu0 0.0
    %288 = vmatpush1.msra.mxu0 0.0
    %289 = vmatprep.subr.mxu0 0.0
    %290 = vmatpush1.msra.mxu0 0.0
    %291 = vmatprep.subr.mxu0 0.0
    %292 = vmatpush1.msra.mxu0 0.0
    %293 = vmatprep.subr.mxu0 0.0
    %294 = vmatpush1.msra.mxu0 0.0
    %295 = vmatprep.subr.mxu0 0.0
    %296 = vmatpush1.msra.mxu0 0.0
    %297 = vmatprep.subr.mxu0 0.0
    %298 = vmatpush1.msra.mxu0 0.0
    %299 = vmatprep.subr.mxu0 0.0
    %300 = vmatpush1.msra.mxu0 0.0
    %301 = vmatprep.mubr.f32.mxu0 0.0
    %302 = vmatmul.mubr.f32.gmra.mrb[0].mxu0 %v96
    %v303 = vpop.f32.mrb[0].mxu0
    %v304 = vadd.f32 0.0, %v303
    %v305 = vpop.f32.mrb[0].mxu0
    %306 = vmatprep.mubr.f32.mxu0 0.0
    %307 = vmatmul.mubr.f32.gmra.mrb[0].mxu0 %v97
    %v308 = vpop.f32.mrb[0].mxu0
    %v309 = vadd.f32 0.0, %v308
    %v310 = vpop.f32.mrb[0].mxu0
    %311 = vmatprep.mubr.f32.mxu0 0.0
    %312 = vmatmul.mubr.f32.gmra.mrb[0].mxu0 %v98
    %v313 = vpop.f32.mrb[0].mxu0
    %v314 = vadd.f32 0.0, %v313
    %v315 = vpop.f32.mrb[0].mxu0
    %316 = vmatprep.mubr.f32.mxu0 0.0
    %317 = vmatmul.mubr.f32.gmra.mrb[0].mxu0 %v99
    %v318 = vpop.f32.mrb[0].mxu0
    %v319 = vadd.f32 0.0, %v318
    %v320 = vpop.f32.mrb[0].mxu0
    %321 = vdwg.mxu0
    %v322 = vlaneseq
    %v323 = vshrl.u32 %v322, 7
    %v324 = vadd.s32 %v323, 8
    %v325 = vlaneseq
    %v326 = vand.u32 %v325, 127
    %v327 = vadd.s32 %v326, 128
    %v328 = vadd.s32 %v326, 256
    %vm329 = vcmp.ge.s32.totalorder %v326, 128
    %vm330 = vcmp.ge.s32.totalorder %v327, 128
    %vm331 = vcmp.ge.s32.totalorder %v328, 128
    %v332 = vsel %vm329, 14, 15
    %v333 = vsel %vm330, 14, 15
    %v334 = vsel %vm331, 14, 15
    %vm335 = vcmp.ge.s32.totalorder %v326, 256
    %vm336 = vcmp.ge.s32.totalorder %v327, 256
    %vm337 = vcmp.ge.s32.totalorder %v328, 256
    %v338 = vsel %vm335, 13, %v332
    %v339 = vsel %vm336, 13, %v333
    %v340 = vsel %vm337, 13, %v334
    %vm341 = vcmp.lt.s32.totalorder %v323, %v338
    %vm342 = vcmp.lt.s32.totalorder %v323, %v339
    %vm343 = vcmp.lt.s32.totalorder %v323, %v340
    %vm344 = vcmp.lt.s32.totalorder %v324, %v338
    %vm345 = vcmp.lt.s32.totalorder %v324, %v339
    %vm346 = vcmp.lt.s32.totalorder %v324, %v340
    %v347 = vsel %vm341, 1, 0
    %v348 = vsel %vm342, 1, 0
    %v349 = vsel %vm343, 1, 0
    %v350 = vsel %vm344, 1, 0
    %v351 = vsel %vm345, 1, 0
    %v352 = vsel %vm346, 1, 0
    %vm353 = vcmp.eq.s32.totalorder %v347, 1
    %vm354 = vcmp.eq.s32.totalorder %v348, 1
    %vm355 = vcmp.eq.s32.totalorder %v349, 1
    %vm356 = vcmp.eq.s32.totalorder %v350, 1
    %vm357 = vcmp.eq.s32.totalorder %v351, 1
    %vm358 = vcmp.eq.s32.totalorder %v352, 1
    %v359 = vsel %vm353, %v215, -inf
    %v360 = vsel %vm354, %v217, -inf
    %v361 = vsel %vm355, %v304, -inf
    %v362 = vsel %vm356, %v221, -inf
    %v363 = vsel %vm357, %v223, -inf
    %v364 = vsel %vm358, %v309, -inf
    %v365 = vsel %vm353, %v227, -inf
    %v366 = vsel %vm354, %v229, -inf
    %v367 = vsel %vm355, %v314, -inf
    %v368 = vsel %vm356, %v233, -inf
    %v369 = vsel %vm357, %v235, -inf
    %v370 = vsel %vm358, %v319, -inf
    %v371 = vmax.f32 %v359, %v362
    %v372 = vrot.slane %v371, 4
    %v373 = vmax.f32 %v371, %v372
    %v374 = vrot.slane %v373, 2
    %v375 = vmax.f32 %v373, %v374
    %v376 = vrot.slane %v375, 1
    %v377 = vmax.f32 %v375, %v376
    %v378 = vmax.f32 %v360, %v363
    %v379 = vrot.slane %v378, 4
    %v380 = vmax.f32 %v378, %v379
    %v381 = vrot.slane %v380, 2
    %v382 = vmax.f32 %v380, %v381
    %v383 = vrot.slane %v382, 1
    %v384 = vmax.f32 %v382, %v383
    %v385 = vmax.f32 %v361, %v364
    %v386 = vrot.slane %v385, 4
    %v387 = vmax.f32 %v385, %v386
    %v388 = vrot.slane %v387, 2
    %v389 = vmax.f32 %v387, %v388
    %v390 = vrot.slane %v389, 1
    %v391 = vmax.f32 %v389, %v390
    %v392 = vmax.f32 %v365, %v368
    %v393 = vrot.slane %v392, 4
    %v394 = vmax.f32 %v392, %v393
    %v395 = vrot.slane %v394, 2
    %v396 = vmax.f32 %v394, %v395
    %v397 = vrot.slane %v396, 1
    %v398 = vmax.f32 %v396, %v397
    %v399 = vmax.f32 %v366, %v369
    %v400 = vrot.slane %v399, 4
    %v401 = vmax.f32 %v399, %v400
    %v402 = vrot.slane %v401, 2
    %v403 = vmax.f32 %v401, %v402
    %v404 = vrot.slane %v403, 1
    %v405 = vmax.f32 %v403, %v404
    %v406 = vmax.f32 %v367, %v370
    %v407 = vrot.slane %v406, 4
    %v408 = vmax.f32 %v406, %v407
    %v409 = vrot.slane %v408, 2
    %v410 = vmax.f32 %v408, %v409
    %v411 = vrot.slane %v410, 1
    %v412 = vmax.f32 %v410, %v411
    %v413 = vld [vmem:[%s2] sm:$0x7]
    %v415 = vlaneseq
    %v416 = vshrl.u32 %v415, 7
    %v417 = vsub.s32 0, %v416
    %v418 = vrot.slane %v413, %v417
    %v419 = vlaneseq
    %v420 = vshrl.u32 %v419, 7
    %v421 = vsub.s32 1, %v420
    %v422 = vrot.slane %v413, %v421
    %v423 = vlaneseq
    %v424 = vshrl.u32 %v423, 7
    %v425 = vsub.s32 2, %v424
    %v426 = vrot.slane %v413, %v425
    %v430 = vadd.f32 %v377, %v418
    %v431 = vadd.f32 %v384, %v422
    %v432 = vadd.f32 %v391, %v426
    %v433 = vadd.f32 %v398, %v418
    %v434 = vadd.f32 %v405, %v422
    %v435 = vadd.f32 %v412, %v426
    %v436 = vmax.f32 %v430, 0.0
    %v437 = vmax.f32 %v431, 0.0
    %v438 = vmax.f32 %v432, 0.0
    %v439 = vmax.f32 %v433, 0.0
    %v440 = vmax.f32 %v434, 0.0
    %v441 = vmax.f32 %v435, 0.0
    %v442 = vld [vmem:[%s3] sm:$0xff]
    %v443 = vld [vmem:[%s3 + $0x8] sm:$0xff]
    %v444 = vld [vmem:[%s3 + $0x10] sm:$0xff]
    %v445 = vld [vmem:[%s3 + $0x18] sm:$0xff]
    %v446 = vld [vmem:[%s3 + $0x20] sm:$0xff]
    %v447 = vld [vmem:[%s3 + $0x28] sm:$0xff]
    %v448 = vld [vmem:[%s3 + $0x30] sm:$0xff]
    %v449 = vld [vmem:[%s3 + $0x38] sm:$0xff]
    %v450 = vld [vmem:[%s3 + $0x40] sm:$0xff]
    %v451 = vld [vmem:[%s3 + $0x48] sm:$0xff]
    %v452 = vld [vmem:[%s3 + $0x50] sm:$0xff]
    %v453 = vld [vmem:[%s3 + $0x58] sm:$0xff]
    %v454 = vld [vmem:[%s3 + $0x60] sm:$0xff]
    %v455 = vld [vmem:[%s3 + $0x68] sm:$0xff]
    %v456 = vld [vmem:[%s3 + $0x70] sm:$0xff]
    %v457 = vld [vmem:[%s3 + $0x78] sm:$0xff]
    %v458 = vld [vmem:[%s3 + $0x80] sm:$0xff]
    %v459 = vld [vmem:[%s3 + $0x88] sm:$0xff]
    %v460 = vld [vmem:[%s3 + $0x90] sm:$0xff]
    %v461 = vld [vmem:[%s3 + $0x98] sm:$0xff]
    %v462 = vld [vmem:[%s3 + $0xa0] sm:$0xff]
    %v463 = vld [vmem:[%s3 + $0xa8] sm:$0xff]
    %v464 = vld [vmem:[%s3 + $0xb0] sm:$0xff]
    %v465 = vld [vmem:[%s3 + $0xb8] sm:$0xff]
    %v466 = vld [vmem:[%s3 + $0xc0] sm:$0xff]
    %v467 = vld [vmem:[%s3 + $0xc8] sm:$0xff]
    %v468 = vld [vmem:[%s3 + $0xd0] sm:$0xff]
    %v469 = vld [vmem:[%s3 + $0xd8] sm:$0xff]
    %v470 = vld [vmem:[%s3 + $0xe0] sm:$0xff]
    %v471 = vld [vmem:[%s3 + $0xe8] sm:$0xff]
    %v472 = vld [vmem:[%s3 + $0xf0] sm:$0xff]
    %v473 = vld [vmem:[%s3 + $0xf8] sm:$0xff]
    %v474 = vld [vmem:[%s3 + $0x100] sm:$0xff]
    %v475 = vld [vmem:[%s3 + $0x108] sm:$0xff]
    %v476 = vld [vmem:[%s3 + $0x110] sm:$0xff]
    %v477 = vld [vmem:[%s3 + $0x118] sm:$0xff]
    %v478 = vld [vmem:[%s3 + $0x120] sm:$0xff]
    %v479 = vld [vmem:[%s3 + $0x128] sm:$0xff]
    %v480 = vld [vmem:[%s3 + $0x130] sm:$0xff]
    %v481 = vld [vmem:[%s3 + $0x138] sm:$0xff]
    %v482 = vld [vmem:[%s3 + $0x140] sm:$0xff]
    %v483 = vld [vmem:[%s3 + $0x148] sm:$0xff]
    %v484 = vld [vmem:[%s3 + $0x150] sm:$0xff]
    %v485 = vld [vmem:[%s3 + $0x158] sm:$0xff]
    %v486 = vld [vmem:[%s3 + $0x160] sm:$0xff]
    %v487 = vld [vmem:[%s3 + $0x168] sm:$0xff]
    %v488 = vld [vmem:[%s3 + $0x170] sm:$0xff]
    %v489 = vld [vmem:[%s3 + $0x178] sm:$0xff]
    %v490 = vld [vmem:[%s4] sm:$0x1]
    %v492 = vlaneseq
    %v493 = vshrl.u32 %v492, 7
    %v494 = vsub.s32 0, %v493
    %v495 = vrot.slane %v490, %v494
    %v503 = vrot.slane %v439, 7
    %vm504 = vcmask 1041409
    %v505 = vsel %vm504, %v503, %v436
    %v506 = vrot.slane %v440, 7
    %v507 = vsel %vm504, %v506, %v437
    %v508 = vrot.slane %v441, 7
    %v509 = vsel %vm504, %v508, %v438
    %513 = vmatprep.subr.mxu0 0.0
    %514 = vmatpush1.msra.mxu0 %v442
    %515 = vmatprep.subr.mxu0 0.0
    %516 = vmatpush1.msra.mxu0 %v443
    %517 = vmatprep.subr.mxu0 0.0
    %518 = vmatpush1.msra.mxu0 %v444
    %519 = vmatprep.subr.mxu0 0.0
    %520 = vmatpush1.msra.mxu0 %v445
    %521 = vmatprep.subr.mxu0 0.0
    %522 = vmatpush1.msra.mxu0 %v446
    %523 = vmatprep.subr.mxu0 0.0
    %524 = vmatpush1.msra.mxu0 %v447
    %525 = vmatprep.subr.mxu0 0.0
    %526 = vmatpush1.msra.mxu0 %v448
    %527 = vmatprep.subr.mxu0 0.0
    %528 = vmatpush1.msra.mxu0 %v449
    %529 = vmatprep.subr.mxu0 0.0
    %530 = vmatpush1.msra.mxu0 %v450
    %531 = vmatprep.subr.mxu0 0.0
    %532 = vmatpush1.msra.mxu0 %v451
    %533 = vmatprep.subr.mxu0 0.0
    %534 = vmatpush1.msra.mxu0 %v452
    %535 = vmatprep.subr.mxu0 0.0
    %536 = vmatpush1.msra.mxu0 %v453
    %537 = vmatprep.subr.mxu0 0.0
    %538 = vmatpush1.msra.mxu0 %v454
    %539 = vmatprep.subr.mxu0 0.0
    %540 = vmatpush1.msra.mxu0 %v455
    %541 = vmatprep.subr.mxu0 0.0
    %542 = vmatpush1.msra.mxu0 %v456
    %543 = vmatprep.subr.mxu0 0.0
    %544 = vmatpush1.msra.mxu0 %v457
    %545 = vmatprep.subr.mxu0 0.0
    %546 = vmatpush1.msra.mxu0 %v458
    %547 = vmatprep.subr.mxu0 0.0
    %548 = vmatpush1.msra.mxu0 %v459
    %549 = vmatprep.subr.mxu0 0.0
    %550 = vmatpush1.msra.mxu0 %v460
    %551 = vmatprep.subr.mxu0 0.0
    %552 = vmatpush1.msra.mxu0 %v461
    %553 = vmatprep.subr.mxu0 0.0
    %554 = vmatpush1.msra.mxu0 %v462
    %555 = vmatprep.subr.mxu0 0.0
    %556 = vmatpush1.msra.mxu0 %v463
    %557 = vmatprep.subr.mxu0 0.0
    %558 = vmatpush1.msra.mxu0 %v464
    %559 = vmatprep.subr.mxu0 0.0
    %560 = vmatpush1.msra.mxu0 %v465
    %561 = vmatprep.subr.mxu0 0.0
    %562 = vmatpush1.msra.mxu0 %v466
    %563 = vmatprep.subr.mxu0 0.0
    %564 = vmatpush1.msra.mxu0 %v467
    %565 = vmatprep.subr.mxu0 0.0
    %566 = vmatpush1.msra.mxu0 %v468
    %567 = vmatprep.subr.mxu0 0.0
    %568 = vmatpush1.msra.mxu0 %v469
    %569 = vmatprep.subr.mxu0 0.0
    %570 = vmatpush1.msra.mxu0 %v470
    %571 = vmatprep.subr.mxu0 0.0
    %572 = vmatpush1.msra.mxu0 %v471
    %573 = vmatprep.subr.mxu0 0.0
    %574 = vmatpush1.msra.mxu0 %v472
    %575 = vmatprep.subr.mxu0 0.0
    %576 = vmatpush1.msra.mxu0 %v473
    %577 = vmatprep.mubr.f32.mxu0 %v507
    %578 = vmatmul.mubr.f32.gmra.mrb[0].mxu0 %v505
    %v579 = vpop.f32.mrb[0].mxu0
    %v580 = vadd.f32 %v495, %v579
    %v581 = vpop.f32.mrb[0].mxu0
    %582 = vdwg.mxu0
    %583 = vmatprep.subr.mxu0 0.0
    %584 = vmatpush1.msra.mxu0 %v474
    %585 = vmatprep.subr.mxu0 0.0
    %586 = vmatpush1.msra.mxu0 %v475
    %587 = vmatprep.subr.mxu0 0.0
    %588 = vmatpush1.msra.mxu0 %v476
    %589 = vmatprep.subr.mxu0 0.0
    %590 = vmatpush1.msra.mxu0 %v477
    %591 = vmatprep.subr.mxu0 0.0
    %592 = vmatpush1.msra.mxu0 %v478
    %593 = vmatprep.subr.mxu0 0.0
    %594 = vmatpush1.msra.mxu0 %v479
    %595 = vmatprep.subr.mxu0 0.0
    %596 = vmatpush1.msra.mxu0 %v480
    %597 = vmatprep.subr.mxu0 0.0
    %598 = vmatpush1.msra.mxu0 %v481
    %599 = vmatprep.subr.mxu0 0.0
    %600 = vmatpush1.msra.mxu0 %v482
    %601 = vmatprep.subr.mxu0 0.0
    %602 = vmatpush1.msra.mxu0 %v483
    %603 = vmatprep.subr.mxu0 0.0
    %604 = vmatpush1.msra.mxu0 %v484
    %605 = vmatprep.subr.mxu0 0.0
    %606 = vmatpush1.msra.mxu0 %v485
    %607 = vmatprep.subr.mxu0 0.0
    %608 = vmatpush1.msra.mxu0 %v486
    %609 = vmatprep.subr.mxu0 0.0
    %610 = vmatpush1.msra.mxu0 %v487
    %611 = vmatprep.subr.mxu0 0.0
    %612 = vmatpush1.msra.mxu0 %v488
    %613 = vmatprep.subr.mxu0 0.0
    %614 = vmatpush1.msra.mxu0 %v489
    %615 = vmatprep.subr.mxu0 0.0
    %616 = vmatpush1.msra.mxu0 0.0
    %617 = vmatprep.subr.mxu0 0.0
    %618 = vmatpush1.msra.mxu0 0.0
    %619 = vmatprep.subr.mxu0 0.0
    %620 = vmatpush1.msra.mxu0 0.0
    %621 = vmatprep.subr.mxu0 0.0
    %622 = vmatpush1.msra.mxu0 0.0
    %623 = vmatprep.subr.mxu0 0.0
    %624 = vmatpush1.msra.mxu0 0.0
    %625 = vmatprep.subr.mxu0 0.0
    %626 = vmatpush1.msra.mxu0 0.0
    %627 = vmatprep.subr.mxu0 0.0
    %628 = vmatpush1.msra.mxu0 0.0
    %629 = vmatprep.subr.mxu0 0.0
    %630 = vmatpush1.msra.mxu0 0.0
    %631 = vmatprep.subr.mxu0 0.0
    %632 = vmatpush1.msra.mxu0 0.0
    %633 = vmatprep.subr.mxu0 0.0
    %634 = vmatpush1.msra.mxu0 0.0
    %635 = vmatprep.subr.mxu0 0.0
    %636 = vmatpush1.msra.mxu0 0.0
    %637 = vmatprep.subr.mxu0 0.0
    %638 = vmatpush1.msra.mxu0 0.0
    %639 = vmatprep.subr.mxu0 0.0
    %640 = vmatpush1.msra.mxu0 0.0
    %641 = vmatprep.subr.mxu0 0.0
    %642 = vmatpush1.msra.mxu0 0.0
    %643 = vmatprep.subr.mxu0 0.0
    %644 = vmatpush1.msra.mxu0 0.0
    %645 = vmatprep.subr.mxu0 0.0
    %646 = vmatpush1.msra.mxu0 0.0
    %647 = vmatprep.mubr.f32.mxu0 0.0
    %648 = vmatmul.mubr.f32.gmra.mrb[0].mxu0 %v509
    %v649 = vpop.f32.mrb[0].mxu0
    %v650 = vadd.f32 %v580, %v649
    %v651 = vpop.f32.mrb[0].mxu0
    %652 = vdwg.mxu0
    %653 = vst [vmem:[#allocation2] sm:$0x3] %v650
    // Predicated region
    $region22: #{model_forward.1} parent=1 // pred_check
      _
    $region23: #{model_forward.1} parent=1 // pred_check_branch
      %655 = sbr.rel (0) target = $region25
    $region24: #{model_forward.1} parent=1 // pred_region
      %s657 = ssub.s32 32, 32
      %658 = vsyncadd [#allocation3], %s657
      %s660 = sshll.u32 [#allocation2], 4
      %s661 = int_to_ptr.vmem [resolvable:$true] %s660
      %663 = dma.vmem_to_hbm [thread:$0]  %s661, 32, %s5, [#allocation3]
    $region25: #{model_forward.1} parent=1 // pred_fallthru
      _
    // Predicated region
    $region26: #{model_forward.1} parent=1 // pred_check
      _
    $region27: #{model_forward.1} parent=1 // pred_check_branch
      %665 = sbr.rel (0) target = $region29
    $region28: #{model_forward.1} parent=1 // pred_region
      %666 = dma.done [#allocation3], 32
    $region29: #{model_forward.1} parent=1 // pred_fallthru
      _
    %667 = vsyncpa [#allocation3], 1

</llo_original>
